<compile_context>
chip_gen: v7x
topology: tpu7x:2x2x1
jax: 0.10.0
libtpu: 0.0.40
codegen_flags: <defaults>
</compile_context>

<pallas_src>
import functools

import jax
import jax.numpy as jnp
from jax.experimental import pallas as pl
from jax.experimental.pallas import tpu as pltpu

# Scoped-VMEM budget: above v5e's 16 MiB default, below v7x's 64 MiB physical.
_VMEM_LIMIT = 48 * 1024 * 1024


def _pick_tile(n, cap, step):
    """Largest multiple of `step` that is <= cap and divides n; else the full axis."""
    if n <= cap:
        return n
    t = (cap // step) * step
    while t >= step:
        if n % t == 0:
            return t
        t -= step
    return n


# ----------------------------------------------------------------------------
# Fused kernel: masked nearest upsample + channel concat + 1x1 conv-BN-ReLU
# ----------------------------------------------------------------------------
def _up_concat_conv_kernel(q_ref, s_ref, f_ref, skip_ref, wt_ref, wb_ref, b_ref,
                           o_ref, *, radius):
    """q_ref    (1, TQ, 4)      query xyz (cols 0..2) + query mask (col 3), f32
       s_ref    (1, 4, Ns)      support xyz (rows 0..2) + support mask (row 3), f32
       f_ref    (1, Ns, Cprev)  support features, bf16
       skip_ref (1, TQ, Cskip)  skip features at the query level, bf16
       wt_ref   (Cprev, Cout)   top rows of the folded conv+BN weight, bf16
       wb_ref   (Cskip, Cout)   bottom rows, bf16
       b_ref    (1, Cout)       folded BN bias, f32
       o_ref    (1, TQ, Cout)   bf16
    """
    q = q_ref[0]
    s = s_ref[0]
    tq = q.shape[0]
    ns = s.shape[1]

    # Pairwise squared distances on the VPU: exact (q - s)^2 accumulated over the
    # 3 coordinates (no K=3 MXU contraction, no |q|^2-2qs+|s|^2 cancellation).
    d2 = jnp.zeros((tq, ns), jnp.float32)
    for k in range(3):
        diff = q[:, k:k + 1] - s[k:k + 1, :]
        d2 = d2 + diff * diff

    qm = q[:, 3:4]      # (TQ, 1) query mask
    sm = s[3:4, :]      # (1, Ns) support mask

    big = jnp.float32(1e30)
    valid = (sm > 0.5) & (d2 <= jnp.float32(radius * radius))
    d2m = jnp.where(valid, d2, big)

    # argmin over supports (first index of the minimum), all ops 2-D.
    mn = jnp.min(d2m, axis=1, keepdims=True)                                # (TQ, 1)
    col = jax.lax.broadcasted_iota(jnp.int32, (tq, ns), 1)                  # (TQ, Ns)
    idx = jnp.min(jnp.where(d2m == mn, col, ns), axis=1, keepdims=True)     # (TQ, 1)
    # no valid neighbour / masked query -> support 0 (matches CUDA zero-init buffer)
    idx = jnp.where((mn >= big) | (qm <= 0.5), 0, idx)

    # Gather nearest support features as a one-hot matmul (0/1 exact in bf16),
    # then the split 1x1 conv:  y = up @ W_top + skip @ W_bot + b, ReLU.
    # TODO(synk): for very large support sets switch this MXU one-hot gather to a
    # scalar-prefetch / DMA row gather instead of O(Nq*Ns*C) FLOPs.
    onehot = (col == idx).astype(jnp.bfloat16)                              # (TQ, Ns)
    gathered = jnp.dot(onehot, f_ref[0], preferred_element_type=jnp.float32)
    y = jnp.dot(gathered.astype(jnp.bfloat16), wt_ref[...],
                preferred_element_type=jnp.float32)
    y = y + jnp.dot(skip_ref[0], wb_ref[...], preferred_element_type=jnp.float32)
    y = y + b_ref[...]
    o_ref[0] = jnp.maximum(y, 0.0).astype(o_ref.dtype)


def upsample_concat_conv(q_pts, s_pts, q_mask, s_mask, feats, skip,
                         w_top, w_bot, b, radius, tile_cap=512):
    """q_pts:(B,Nq,3) s_pts:(B,Ns,3) masks:(B,Nq)/(B,Ns) feats:(B,Ns,Cprev)[bf16]
    skip:(B,Nq,Cskip)[bf16] -> (B,Nq,Cout)[bf16]."""
    B, Nq, _ = q_pts.shape
    Ns = s_pts.shape[1]
    Cprev = feats.shape[2]
    Cskip = skip.shape[2]
    Cout = w_top.shape[1]

    # Pack points + mask so the kernel sees 2 lane-friendly operands instead of 4.
    qpack = jnp.concatenate(
        [q_pts.astype(jnp.float32),
         q_mask.reshape(B, Nq, 1).astype(jnp.float32)], axis=-1)            # (B, Nq, 4)
    spack = jnp.concatenate(
        [jnp.transpose(s_pts.astype(jnp.float32), (0, 2, 1)),
         s_mask.reshape(B, 1, Ns).astype(jnp.float32)], axis=1)             # (B, 4, Ns)

    TQ = _pick_tile(Nq, cap=tile_cap, step=8)
    grid = (B, Nq // TQ)
    kernel = functools.partial(_up_concat_conv_kernel, radius=float(radius))
    return pl.pallas_call(
        kernel,
        out_shape=jax.ShapeDtypeStruct((B, Nq, Cout), jnp.bfloat16),
        grid=grid,
        in_specs=[
            pl.BlockSpec((1, TQ, 4), lambda bb, qq: (bb, qq, 0)),
            pl.BlockSpec((1, 4, Ns), lambda bb, qq: (bb, 0, 0)),
            pl.BlockSpec((1, Ns, Cprev), lambda bb, qq: (bb, 0, 0)),
            pl.BlockSpec((1, TQ, Cskip), lambda bb, qq: (bb, qq, 0)),
            pl.BlockSpec((Cprev, Cout), lambda bb, qq: (0, 0)),
            pl.BlockSpec((Cskip, Cout), lambda bb, qq: (0, 0)),
            pl.BlockSpec((1, Cout), lambda bb, qq: (0, 0)),
        ],
        out_specs=pl.BlockSpec((1, TQ, Cout), lambda bb, qq: (bb, qq, 0)),
        compiler_params=pltpu.CompilerParams(
            dimension_semantics=("parallel", "parallel"),
            vmem_limit_bytes=_VMEM_LIMIT),
    )(qpack, spack, feats, skip, w_top, w_bot, b)


# ----------------------------------------------------------------------------
# Fused head: (C->C conv-BN-ReLU) + (C->num_classes conv + bias), logits emitted
# already transposed to (B, num_classes, N) so the point axis is lane-dense.
# ----------------------------------------------------------------------------
def _head_kernel(x_ref, w0_ref, b0_ref, w1t_ref, b1_ref, o_ref):
    x = x_ref[0]                                                            # (TQ, C) bf16
    h = jnp.dot(x, w0_ref[...], preferred_element_type=jnp.float32) + b0_ref[...]
    h = jnp.maximum(h, 0.0).astype(jnp.bfloat16)                            # (TQ, C)
    # logits^T = W1 @ h^T via an rhs-transposed contraction -> (NC, TQ), lane-dense.
    lt = jax.lax.dot_general(w1t_ref[...], h, (((1,), (1,)), ((), ())),
                             preferred_element_type=jnp.float32)
    o_ref[0] = lt + b1_ref[...]


def fused_head(x, w0, b0, w1t, b1, tile_cap=1024):
    """x:(B,N,C)[bf16] w0:(C,C)[bf16] b0:(1,C) w1t:(NC,C)[bf16] b1:(NC,1) -> (B,NC,N)[f32]."""
    B, N, C = x.shape
    NC = w1t.shape[0]
    TN = _pick_tile(N, cap=tile_cap, step=128)   # 128-step keeps output stores lane-aligned
    grid = (B, N // TN)
    return pl.pallas_call(
        _head_kernel,
        out_shape=jax.ShapeDtypeStruct((B, NC, N), jnp.float32),
        grid=grid,
        in_specs=[
            pl.BlockSpec((1, TN, C), lambda bb, qq: (bb, qq, 0)),
            pl.BlockSpec((C, C), lambda bb, qq: (0, 0)),
            pl.BlockSpec((1, C), lambda bb, qq: (0, 0)),
            pl.BlockSpec((NC, C), lambda bb, qq: (0, 0)),
            pl.BlockSpec((NC, 1), lambda bb, qq: (0, 0)),
        ],
        out_specs=pl.BlockSpec((1, NC, TN), lambda bb, qq: (bb, 0, qq)),
        compiler_params=pltpu.CompilerParams(
            dimension_semantics=("parallel", "parallel"),
            vmem_limit_bytes=_VMEM_LIMIT),
    )(x, w0, b0, w1t, b1)


# ----------------------------------------------------------------------------
# Parameter construction (deterministic; BN folded into W / b at eval time)
# ----------------------------------------------------------------------------
def _fold_conv_bn(key, cin, cout, eps=1e-5):
    k1, k2, k3, k4, k5 = jax.random.split(key, 5)
    w = jax.random.normal(k1, (cout, cin), jnp.float32) / jnp.sqrt(jnp.float32(cin))
    gamma = jax.random.uniform(k2, (cout,), jnp.float32, 0.5, 1.5)
    beta = 0.1 * jax.random.normal(k3, (cout,), jnp.float32)
    mean = 0.1 * jax.random.normal(k4, (cout,), jnp.float32)
    var = jax.random.uniform(k5, (cout,), jnp.float32, 0.5, 1.5)
    scale = gamma / jnp.sqrt(var + eps)
    w_fold = (w * scale[:, None]).T                 # (cin, cout)
    b_fold = (beta - mean * scale).reshape(1, cout)
    return w_fold, b_fold


def _split_up_conv(key, cprev, cskip, cout):
    # concat order is [upsampled | skip] -> split the folded weight row-wise.
    w, b = _fold_conv_bn(key, cprev + cskip, cout)
    return {"w_top": w[:cprev].astype(jnp.bfloat16),
            "w_bot": w[cprev:].astype(jnp.bfloat16),
            "b": b}


def init_scene_seg_head_params(key, num_classes, width):
    ks = jax.random.split(key, 7)
    c = width // 2
    w0, b0 = _fold_conv_bn(ks[4], c, c)
    w1 = jax.random.normal(ks[5], (num_classes, c), jnp.float32) / jnp.sqrt(jnp.float32(c))
    b1 = 0.1 * jax.random.normal(ks[6], (num_classes,), jnp.float32)
    return {
        "up_conv0": _split_up_conv(ks[0], 16 * width, 8 * width, 4 * width),   # 24w -> 4w
        "up_conv1": _split_up_conv(ks[1], 4 * width, 4 * width, 2 * width),    # 8w  -> 2w
        "up_conv2": _split_up_conv(ks[2], 2 * width, 2 * width, width),        # 4w  -> w
        "up_conv3": _split_up_conv(ks[3], width, width, c),                    # 2w  -> w//2
        "head": {"w0": w0.astype(jnp.bfloat16), "b0": b0,
                 "w1t": w1.astype(jnp.bfloat16),   # torch (out,in) layout == transposed
                 "b1": b1.reshape(num_classes, 1)},
    }


# ----------------------------------------------------------------------------
# SceneSegHead forward
# ----------------------------------------------------------------------------
def scene_seg_head_forward(batched_inputs, params, base_radius, nsamples):
    # `nsamples` accepted for API parity; 'nearest' mode only ever uses neighbour 0.
    del nsamples
    pts = {i: batched_inputs[f"{i}_points"] for i in range(1, 6)}
    msk = {i: batched_inputs[f"{i}_masks"] for i in range(1, 6)}
    # PyTorch feats are (B, C, N); channel-last + bf16 for lane-dense MXU inputs.
    fts = {i: jnp.transpose(batched_inputs[f"{i}_feats"], (0, 2, 1)).astype(jnp.bfloat16)
           for i in range(1, 6)}

    f = upsample_concat_conv(pts[4], pts[5], msk[4], msk[5], fts[5], fts[4],
                             radius=8 * base_radius, **params["up_conv0"])
    f = upsample_concat_conv(pts[3], pts[4], msk[3], msk[4], f, fts[3],
                             radius=4 * base_radius, **params["up_conv1"])
    f = upsample_concat_conv(pts[2], pts[3], msk[2], msk[3], f, fts[2],
                             radius=2 * base_radius, **params["up_conv2"])
    f = upsample_concat_conv(pts[1], pts[2], msk[1], msk[2], f, fts[1],
                             radius=base_radius, **params["up_conv3"])
    # Fused head emits logits directly in PyTorch layout (B, num_classes, N1).
    return fused_head(f, **params["head"])


# ----------------------------------------------------------------------------
# Demo
# ----------------------------------------------------------------------------
if __name__ == "__main__":
    key = jax.random.PRNGKey(0)

    B = 2
    width = 8
    num_classes = 13
    base_radius = 0.5
    nsamples = [16, 16, 16, 16]

    n_pts = {1: 128, 2: 64, 3: 32, 4: 16, 5: 8}
    n_ch = {1: width, 2: 2 * width, 3: 4 * width, 4: 8 * width, 5: 16 * width}

    kp, kf, kparams = jax.random.split(key, 3)
    kps = jax.random.split(kp, 5)
    kfs = jax.random.split(kf, 5)

    batched_inputs = {}
    for lvl in range(1, 6):
        n = n_pts[lvl]
        pts = jax.random.uniform(kps[lvl - 1], (B, n, 3), jnp.float32, 0.0, 1.0)
        mask = jnp.ones((B, n), jnp.float32).at[:, -1].set(0.0)   # last point padded
        feats = jax.random.normal(kfs[lvl - 1], (B, n_ch[lvl], n), jnp.float32)  # (B, C, N)
        batched_inputs[f"{lvl}_points"] = pts
        batched_inputs[f"{lvl}_masks"] = mask
        batched_inputs[f"{lvl}_feats"] = feats

    params = init_scene_seg_head_params(kparams, num_classes, width)

    logits = scene_seg_head_forward(batched_inputs, params, base_radius, nsamples)
    logits = jax.block_until_ready(logits)
    assert logits.shape == (B, num_classes, n_pts[1]), logits.shape
    assert bool(jnp.all(jnp.isfinite(logits)))
    print("KERNEL_OK")
</pallas_src>

<mosaic_0001>
module attributes {stable_mosaic.version = 11 : i64} {
  func.func @_up_concat_conv_kernel(%arg0: i32, %arg1: i32, %arg2: memref<1x16x4xf32, #tpu.memory_space<vmem>>, %arg3: memref<1x4x8xf32, #tpu.memory_space<vmem>>, %arg4: memref<1x8x128xbf16, #tpu.memory_space<vmem>>, %arg5: memref<1x16x64xbf16, #tpu.memory_space<vmem>>, %arg6: memref<128x32xbf16, #tpu.memory_space<vmem>>, %arg7: memref<64x32xbf16, #tpu.memory_space<vmem>>, %arg8: memref<1x32xf32, #tpu.memory_space<vmem>>, %arg9: memref<1x16x32xbf16, #tpu.memory_space<vmem>>) attributes {dimension_semantics = [#tpu.dimension_semantics<parallel>, #tpu.dimension_semantics<parallel>], iteration_bounds = array<i64: 2, 1>, scalar_prefetch = 0 : i64, scratch_operands = 0 : i64, tpu.core_type = #tpu.core_type<tc>, window_params = [{transform_indices = @transform_0, window_bounds = array<i64: 1, 16, 4>}, {transform_indices = @transform_1, window_bounds = array<i64: 1, 4, 8>}, {transform_indices = @transform_2, window_bounds = array<i64: 1, 8, 128>}, {transform_indices = @transform_3, window_bounds = array<i64: 1, 16, 64>}, {pipeline_mode = #tpu.pipeline_mode<synchronous>, transform_indices = @transform_4, window_bounds = array<i64: 128, 32>}, {pipeline_mode = #tpu.pipeline_mode<synchronous>, transform_indices = @transform_5, window_bounds = array<i64: 64, 32>}, {pipeline_mode = #tpu.pipeline_mode<synchronous>, transform_indices = @transform_6, window_bounds = array<i64: 1, 32>}, {transform_indices = @transform_7, window_bounds = array<i64: 1, 16, 32>}]} {
    %c0 = arith.constant 0 : index
    %c0_0 = arith.constant 0 : index
    %c0_1 = arith.constant 0 : index
    %0 = vector.load %arg2[%c0, %c0_0, %c0_1] : memref<1x16x4xf32, #tpu.memory_space<vmem>>, vector<1x16x4xf32>
    %1 = vector.shape_cast %0 : vector<1x16x4xf32> to vector<16x4xf32>
    %c0_2 = arith.constant 0 : index
    %c0_3 = arith.constant 0 : index
    %c0_4 = arith.constant 0 : index
    %2 = vector.load %arg3[%c0_2, %c0_3, %c0_4] : memref<1x4x8xf32, #tpu.memory_space<vmem>>, vector<1x4x8xf32>
    %3 = vector.shape_cast %2 : vector<1x4x8xf32> to vector<4x8xf32>
    %cst = arith.constant 0.000000e+00 : f32
    %4 = vector.broadcast %cst : f32 to vector<16x8xf32>
    %5 = vector.extract_strided_slice %1 {offsets = [0, 0], sizes = [16, 1], strides = [1, 1]} : vector<16x4xf32> to vector<16x1xf32>
    %6 = vector.extract_strided_slice %3 {offsets = [0, 0], sizes = [1, 8], strides = [1, 1]} : vector<4x8xf32> to vector<1x8xf32>
    %7 = vector.broadcast %5 : vector<16x1xf32> to vector<16x8xf32>
    %8 = vector.broadcast %6 : vector<1x8xf32> to vector<16x8xf32>
    %9 = arith.subf %7, %8 : vector<16x8xf32>
    %10 = arith.mulf %9, %9 : vector<16x8xf32>
    %11 = arith.addf %4, %10 : vector<16x8xf32>
    %12 = vector.extract_strided_slice %1 {offsets = [0, 1], sizes = [16, 1], strides = [1, 1]} : vector<16x4xf32> to vector<16x1xf32>
    %13 = vector.extract_strided_slice %3 {offsets = [1, 0], sizes = [1, 8], strides = [1, 1]} : vector<4x8xf32> to vector<1x8xf32>
    %14 = vector.broadcast %12 : vector<16x1xf32> to vector<16x8xf32>
    %15 = vector.broadcast %13 : vector<1x8xf32> to vector<16x8xf32>
    %16 = arith.subf %14, %15 : vector<16x8xf32>
    %17 = arith.mulf %16, %16 : vector<16x8xf32>
    %18 = arith.addf %11, %17 : vector<16x8xf32>
    %19 = vector.extract_strided_slice %1 {offsets = [0, 2], sizes = [16, 1], strides = [1, 1]} : vector<16x4xf32> to vector<16x1xf32>
    %20 = vector.extract_strided_slice %3 {offsets = [2, 0], sizes = [1, 8], strides = [1, 1]} : vector<4x8xf32> to vector<1x8xf32>
    %21 = vector.broadcast %19 : vector<16x1xf32> to vector<16x8xf32>
    %22 = vector.broadcast %20 : vector<1x8xf32> to vector<16x8xf32>
    %23 = arith.subf %21, %22 : vector<16x8xf32>
    %24 = arith.mulf %23, %23 : vector<16x8xf32>
    %25 = arith.addf %18, %24 : vector<16x8xf32>
    %26 = vector.extract_strided_slice %1 {offsets = [0, 3], sizes = [16, 1], strides = [1, 1]} : vector<16x4xf32> to vector<16x1xf32>
    %27 = vector.extract_strided_slice %3 {offsets = [3, 0], sizes = [1, 8], strides = [1, 1]} : vector<4x8xf32> to vector<1x8xf32>
    %cst_5 = arith.constant 5.000000e-01 : f32
    %28 = vector.broadcast %cst_5 : f32 to vector<1x8xf32>
    %29 = arith.cmpf ogt, %27, %28 : vector<1x8xf32>
    %cst_6 = arith.constant 1.600000e+01 : f32
    %30 = vector.broadcast %cst_6 : f32 to vector<16x8xf32>
    %31 = arith.cmpf ole, %25, %30 : vector<16x8xf32>
    %32 = vector.broadcast %29 : vector<1x8xi1> to vector<16x8xi1>
    %33 = arith.andi %32, %31 : vector<16x8xi1>
    %cst_7 = arith.constant 1.000000e+30 : f32
    %34 = vector.broadcast %cst_7 : f32 to vector<16x8xf32>
    %35 = arith.select %33, %25, %34 : vector<16x8xi1>, vector<16x8xf32>
    %cst_8 = arith.constant dense<0x7F800000> : vector<16xf32>
    %36 = vector.multi_reduction <minimumf>, %35, %cst_8 [1] : vector<16x8xf32> to vector<16xf32>
    %37 = vector.shape_cast %36 : vector<16xf32> to vector<16x1xf32>
    %38 = tpu.iota {dimensions = array<i32: 1>} : vector<16x8xi32>
    %39 = vector.broadcast %37 : vector<16x1xf32> to vector<16x8xf32>
    %40 = arith.cmpf oeq, %35, %39 : vector<16x8xf32>
    %c8_i32 = arith.constant 8 : i32
    %41 = vector.broadcast %c8_i32 : i32 to vector<16x8xi32>
    %42 = arith.select %40, %38, %41 : vector<16x8xi1>, vector<16x8xi32>
    %cst_9 = arith.constant dense<2147483647> : vector<16xi32>
    %43 = vector.multi_reduction <minsi>, %42, %cst_9 [1] : vector<16x8xi32> to vector<16xi32>
    %44 = vector.shape_cast %43 : vector<16xi32> to vector<16x1xi32>
    %cst_10 = arith.constant 1.000000e+30 : f32
    %45 = vector.broadcast %cst_10 : f32 to vector<16x1xf32>
    %46 = arith.cmpf oge, %37, %45 : vector<16x1xf32>
    %cst_11 = arith.constant 5.000000e-01 : f32
    %47 = vector.broadcast %cst_11 : f32 to vector<16x1xf32>
    %48 = arith.cmpf ole, %26, %47 : vector<16x1xf32>
    %49 = arith.ori %46, %48 : vector<16x1xi1>
    %c0_i32 = arith.constant 0 : i32
    %50 = vector.broadcast %c0_i32 : i32 to vector<16x1xi32>
    %51 = arith.select %49, %50, %44 : vector<16x1xi1>, vector<16x1xi32>
    %52 = vector.broadcast %51 : vector<16x1xi32> to vector<16x8xi32>
    %53 = arith.cmpi eq, %38, %52 : vector<16x8xi32>
    %54 = arith.extui %53 : vector<16x8xi1> to vector<16x8xi32>
    %55 = arith.sitofp %54 : vector<16x8xi32> to vector<16x8xf32>
    %56 = arith.truncf %55 : vector<16x8xf32> to vector<16x8xbf16>
    %c0_12 = arith.constant 0 : index
    %c0_13 = arith.constant 0 : index
    %c0_14 = arith.constant 0 : index
    %57 = vector.load %arg4[%c0_12, %c0_13, %c0_14] : memref<1x8x128xbf16, #tpu.memory_space<vmem>>, vector<1x8x128xbf16>
    %58 = vector.shape_cast %57 : vector<1x8x128xbf16> to vector<8x128xbf16>
    %cst_15 = arith.constant dense<0.000000e+00> : vector<16x128xf32>
    %59 = tpu.matmul %56, %58, %cst_15 {dimension_numbers = #tpu.dot_dimension_numbers<[1], [0], [0], [1], [0, 0, 1, 1], [], []>} : vector<16x8xbf16>, vector<8x128xbf16>, vector<16x128xf32> -> vector<16x128xf32>
    %60 = arith.truncf %59 : vector<16x128xf32> to vector<16x128xbf16>
    %c0_16 = arith.constant 0 : index
    %c0_17 = arith.constant 0 : index
    %61 = vector.load %arg6[%c0_16, %c0_17] : memref<128x32xbf16, #tpu.memory_space<vmem>>, vector<128x32xbf16>
    %cst_18 = arith.constant dense<0.000000e+00> : vector<16x32xf32>
    %62 = tpu.matmul %60, %61, %cst_18 {dimension_numbers = #tpu.dot_dimension_numbers<[1], [0], [0], [1], [0, 0, 1, 1], [], []>} : vector<16x128xbf16>, vector<128x32xbf16>, vector<16x32xf32> -> vector<16x32xf32>
    %c0_19 = arith.constant 0 : index
    %c0_20 = arith.constant 0 : index
    %c0_21 = arith.constant 0 : index
    %63 = vector.load %arg5[%c0_19, %c0_20, %c0_21] : memref<1x16x64xbf16, #tpu.memory_space<vmem>>, vector<1x16x64xbf16>
    %64 = vector.shape_cast %63 : vector<1x16x64xbf16> to vector<16x64xbf16>
    %c0_22 = arith.constant 0 : index
    %c0_23 = arith.constant 0 : index
    %65 = vector.load %arg7[%c0_22, %c0_23] : memref<64x32xbf16, #tpu.memory_space<vmem>>, vector<64x32xbf16>
    %cst_24 = arith.constant dense<0.000000e+00> : vector<16x32xf32>
    %66 = tpu.matmul %64, %65, %cst_24 {dimension_numbers = #tpu.dot_dimension_numbers<[1], [0], [0], [1], [0, 0, 1, 1], [], []>} : vector<16x64xbf16>, vector<64x32xbf16>, vector<16x32xf32> -> vector<16x32xf32>
    %67 = arith.addf %62, %66 : vector<16x32xf32>
    %c0_25 = arith.constant 0 : index
    %c0_26 = arith.constant 0 : index
    %68 = vector.load %arg8[%c0_25, %c0_26] : memref<1x32xf32, #tpu.memory_space<vmem>>, vector<1x32xf32>
    %69 = vector.broadcast %68 : vector<1x32xf32> to vector<16x32xf32>
    %70 = arith.addf %67, %69 : vector<16x32xf32>
    %cst_27 = arith.constant 0.000000e+00 : f32
    %71 = vector.broadcast %cst_27 : f32 to vector<16x32xf32>
    %72 = arith.maximumf %70, %71 : vector<16x32xf32>
    %73 = arith.truncf %72 : vector<16x32xf32> to vector<16x32xbf16>
    %c0_28 = arith.constant 0 : index
    %c0_29 = arith.constant 0 : index
    %c0_30 = arith.constant 0 : index
    %74 = vector.load %arg9[%c0_28, %c0_29, %c0_30] : memref<1x16x32xbf16, #tpu.memory_space<vmem>>, vector<1x16x32xbf16>
    %75 = vector.shape_cast %74 : vector<1x16x32xbf16> to vector<16x32xbf16>
    %76 = vector.shape_cast %73 : vector<16x32xbf16> to vector<1x16x32xbf16>
    tpu.vector_store %arg9[%c0_28, %c0_29, %c0_30], %76 {strides = array<i32>} : memref<1x16x32xbf16, #tpu.memory_space<vmem>>, vector<1x16x32xbf16>,
    return
  }
  func.func @transform_0(%arg0: i32, %arg1: i32) -> (i32, i32, i32) {
    %c0_i32 = arith.constant 0 : i32
    %c0_i32_0 = arith.constant 0 : i32
    return %arg0, %arg1, %c0_i32 : i32, i32, i32
  }
  func.func @transform_1(%arg0: i32, %arg1: i32) -> (i32, i32, i32) {
    %c0_i32 = arith.constant 0 : i32
    %c0_i32_0 = arith.constant 0 : i32
    %c0_i32_1 = arith.constant 0 : i32
    return %arg0, %c0_i32, %c0_i32_0 : i32, i32, i32
  }
  func.func @transform_2(%arg0: i32, %arg1: i32) -> (i32, i32, i32) {
    %c0_i32 = arith.constant 0 : i32
    %c0_i32_0 = arith.constant 0 : i32
    %c0_i32_1 = arith.constant 0 : i32
    return %arg0, %c0_i32, %c0_i32_0 : i32, i32, i32
  }
  func.func @transform_3(%arg0: i32, %arg1: i32) -> (i32, i32, i32) {
    %c0_i32 = arith.constant 0 : i32
    %c0_i32_0 = arith.constant 0 : i32
    return %arg0, %arg1, %c0_i32 : i32, i32, i32
  }
  func.func @transform_4(%arg0: i32, %arg1: i32) -> (i32, i32) {
    %c0_i32 = arith.constant 0 : i32
    %c0_i32_0 = arith.constant 0 : i32
    %c0_i32_1 = arith.constant 0 : i32
    return %c0_i32, %c0_i32_0 : i32, i32
  }
  func.func @transform_5(%arg0: i32, %arg1: i32) -> (i32, i32) {
    %c0_i32 = arith.constant 0 : i32
    %c0_i32_0 = arith.constant 0 : i32
    %c0_i32_1 = arith.constant 0 : i32
    return %c0_i32, %c0_i32_0 : i32, i32
  }
  func.func @transform_6(%arg0: i32, %arg1: i32) -> (i32, i32) {
    %c0_i32 = arith.constant 0 : i32
    %c0_i32_0 = arith.constant 0 : i32
    %c0_i32_1 = arith.constant 0 : i32
    return %c0_i32, %c0_i32_0 : i32, i32
  }
  func.func @transform_7(%arg0: i32, %arg1: i32) -> (i32, i32, i32) {
    %c0_i32 = arith.constant 0 : i32
    %c0_i32_0 = arith.constant 0 : i32
    return %arg0, %arg1, %c0_i32 : i32, i32, i32
  }
}

</mosaic_0001>

<llo_original>
// kernel: tpu_custom_call.1
$region0: #{tpu_custom_call.1}
  #allocation0 [shape = 'u32[]', space=smem, size = 0x4, offset = 0x4, fixed_abs, tag = 'smem constant byte address 0x4 - core index']
  #allocation1 [shape = 'u32[144,128]{1,0:T(1,128)}', space=vmem, size = 0x12000, scoped, tag = 'internal scratch']
  %s0 = inlined_call_operand.vmem [shape: f32[2,16,4], index: 0, kind: input, shape index: {}]
  %s1 = inlined_call_operand.vmem [shape: f32[2,4,8], index: 1, kind: input, shape index: {}]
  %s2 = inlined_call_operand.vmem [shape: bf16[2,8,128], index: 2, kind: input, shape index: {}]
  %s3 = inlined_call_operand.vmem [shape: bf16[2,16,64], index: 3, kind: input, shape index: {}]
  %s4 = inlined_call_operand.vmem [shape: bf16[128,32], index: 4, kind: input, shape index: {}]
  %s5 = inlined_call_operand.vmem [shape: bf16[64,32], index: 5, kind: input, shape index: {}]
  %s6 = inlined_call_operand.vmem [shape: f32[1,32], index: 6, kind: input, shape index: {}]
  %s7 = inlined_call_operand.hbm [shape: bf16[2,16,32], index: 7, kind: output, shape index: {}]
  %s8 = sld [smem:[#allocation0]]
  $region61: #{tpu_custom_call.1} parent=0
    _
  %s10 = ssub.s32 1, %s8
  %s11 = scalar_select 0, %s10, %s8
  $region1: #{tpu_custom_call.1} parent=0
    #allocation2 [shape = 'u8[8192]{0}', space=vmem, size = 0x2000, scoped, tag = 'output window, operand 0']
    #allocation3 [shape = 's32[2]{0}', space=sflag, size = 0x8, scoped, tag = 'scoped memory for tpu_custom_call.1']
    %12 = vsyncpa [#allocation3], 0
    %s13 = scalar_lea.sflag [#allocation3], 1
    %14 = vsyncpa %s13, 0
    loop: start=0, step=1, limit=4
    $region2: #{tpu_custom_call.1} parent=1 // loop_pre_header
      _
    $region3: #{tpu_custom_call.1} parent=1 // loop_header
      %s16 = sphi 0, %s20
      %p17 = scmp.ge.s32.totalorder %s16, 4
      %s23 = sphi 0, %s35
      %s24 = sphi 0, %s31
      %s25 = sphi 0, %s23
      %s26 = sphi 0, %s24
      %s27 = sphi 0, %s25
      %s28 = sphi 0, %s26
      %s40 = sphi 0, %s42
      %s43 = sphi 0, %s40
      %s44 = sphi 0, %s43
      %s60 = sphi 0, %s44
      %s66 = sphi 0, %s68
      %s69 = sphi 0, %s66
      %s70 = sphi 0, %s69
      %s86 = sphi 0, %s70
      %s92 = sphi 0, %s94
      %s95 = sphi 0, %s92
      %s96 = sphi 0, %s95
      %s112 = sphi 0, %s96
      %s120 = sphi 0, %s122
      %s123 = sphi 0, %s120
      %s124 = sphi 0, %s123
      %s140 = sphi 0, %s124
      %s144 = sphi 0, %s144
      %s146 = sphi 0, %s144
      %s147 = sphi 0, %s146
      %s161 = sphi 0, %s147
      %s165 = sphi 0, %s165
      %s167 = sphi 0, %s165
      %s168 = sphi 0, %s167
      %s182 = sphi 0, %s168
      %s186 = sphi 0, %s186
      %s188 = sphi 0, %s186
      %s189 = sphi 0, %s188
      %s203 = sphi 0, %s189
      %s211 = sphi 0, %s213
      %s214 = sphi 0, %s211
      %s215 = sphi 0, %s214
      %s231 = sphi 0, %s215
    $region4: #{tpu_custom_call.1} parent=1 // loop_header_branch
      %19 = sbr.rel (%p17) target = $region8
    $region5: #{tpu_custom_call.1} parent=1 // loop_body
      %s21 = ssub.s32 %s16, 1
      %s22 = ssub.s32 %s16, 2
      %s29 = sadd.s32 1, %s24
      %p30 = scmp.ge.s32.totalorder %s29, 1
      %s31 = scalar_select %p30, 0, %s29
      %s32 = sadd.s32 1, %s23
      %s33 = scalar_select %p30, %s32, %s23
      %p34 = scmp.ge.s32.totalorder %s33, 2
      %s35 = scalar_select %p34, 0, %s33
      %s36 = ssub.s32 %s23, %s35
      %s37 = ssub.s32 %s24, %s31
      %s38 = sor.u32 %s36, %s37
      %p39 = scmp.eq.s32.totalorder %s38, 0
      %s41 = sadd.s32 %s40, 1
      %s42 = scalar_select %p39, %s40, %s41
      %p45 = pneg %p39
      %p46 = scmp.eq.s32.totalorder %s16, 1
      %p47 = por %p45, %p46
      %p48 = scmp.ne.s32.totalorder %s40, %s43
      %p49 = scmp.eq.s32.totalorder %s16, 0
      %p50 = por %p48, %p49
      %p51 = scmp.ne.s32.totalorder %s40, %s43
      %p52 = scmp.eq.s32.totalorder %s21, 1
      %p53 = por %p51, %p52
      %p54 = scmp.ne.s32.totalorder %s43, %s44
      %p55 = scmp.eq.s32.totalorder %s21, 0
      %p56 = por %p54, %p55
      %p57 = scmp.ne.s32.totalorder %s43, %s44
      %p58 = scmp.eq.s32.totalorder %s22, 1
      %p59 = por %p57, %p58
      %p61 = scmp.ne.s32.totalorder %s44, %s60
      %p62 = scmp.eq.s32.totalorder %s22, 0
      %p63 = por %p61, %p62
      %s64 = ssub.s32 %s23, %s35
      %p65 = scmp.eq.s32.totalorder %s64, 0
      %s67 = sadd.s32 %s66, 1
      %s68 = scalar_select %p65, %s66, %s67
      %p71 = pneg %p65
      %p72 = scmp.eq.s32.totalorder %s16, 1
      %p73 = por %p71, %p72
      %p74 = scmp.ne.s32.totalorder %s66, %s69
      %p75 = scmp.eq.s32.totalorder %s16, 0
      %p76 = por %p74, %p75
      %p77 = scmp.ne.s32.totalorder %s66, %s69
      %p78 = scmp.eq.s32.totalorder %s21, 1
      %p79 = por %p77, %p78
      %p80 = scmp.ne.s32.totalorder %s69, %s70
      %p81 = scmp.eq.s32.totalorder %s21, 0
      %p82 = por %p80, %p81
      %p83 = scmp.ne.s32.totalorder %s69, %s70
      %p84 = scmp.eq.s32.totalorder %s22, 1
      %p85 = por %p83, %p84
      %p87 = scmp.ne.s32.totalorder %s70, %s86
      %p88 = scmp.eq.s32.totalorder %s22, 0
      %p89 = por %p87, %p88
      %s90 = ssub.s32 %s23, %s35
      %p91 = scmp.eq.s32.totalorder %s90, 0
      %s93 = sadd.s32 %s92, 1
      %s94 = scalar_select %p91, %s92, %s93
      %p97 = pneg %p91
      %p98 = scmp.eq.s32.totalorder %s16, 1
      %p99 = por %p97, %p98
      %p100 = scmp.ne.s32.totalorder %s92, %s95
      %p101 = scmp.eq.s32.totalorder %s16, 0
      %p102 = por %p100, %p101
      %p103 = scmp.ne.s32.totalorder %s92, %s95
      %p104 = scmp.eq.s32.totalorder %s21, 1
      %p105 = por %p103, %p104
      %p106 = scmp.ne.s32.totalorder %s95, %s96
      %p107 = scmp.eq.s32.totalorder %s21, 0
      %p108 = por %p106, %p107
      %p109 = scmp.ne.s32.totalorder %s95, %s96
      %p110 = scmp.eq.s32.totalorder %s22, 1
      %p111 = por %p109, %p110
      %p113 = scmp.ne.s32.totalorder %s96, %s112
      %p114 = scmp.eq.s32.totalorder %s22, 0
      %p115 = por %p113, %p114
      %s116 = ssub.s32 %s23, %s35
      %s117 = ssub.s32 %s24, %s31
      %s118 = sor.u32 %s116, %s117
      %p119 = scmp.eq.s32.totalorder %s118, 0
      %s121 = sadd.s32 %s120, 1
      %s122 = scalar_select %p119, %s120, %s121
      %p125 = pneg %p119
      %p126 = scmp.eq.s32.totalorder %s16, 1
      %p127 = por %p125, %p126
      %p128 = scmp.ne.s32.totalorder %s120, %s123
      %p129 = scmp.eq.s32.totalorder %s16, 0
      %p130 = por %p128, %p129
      %p131 = scmp.ne.s32.totalorder %s120, %s123
      %p132 = scmp.eq.s32.totalorder %s21, 1
      %p133 = por %p131, %p132
      %p134 = scmp.ne.s32.totalorder %s123, %s124
      %p135 = scmp.eq.s32.totalorder %s21, 0
      %p136 = por %p134, %p135
      %p137 = scmp.ne.s32.totalorder %s123, %s124
      %p138 = scmp.eq.s32.totalorder %s22, 1
      %p139 = por %p137, %p138
      %p141 = scmp.ne.s32.totalorder %s124, %s140
      %p142 = scmp.eq.s32.totalorder %s22, 0
      %p143 = por %p141, %p142
      %s145 = sadd.s32 %s144, 1
      %p148 = scmp.eq.s32.totalorder %s16, 1
      %p149 = scmp.ne.s32.totalorder %s144, %s146
      %p150 = scmp.eq.s32.totalorder %s16, 0
      %p151 = por %p149, %p150
      %p152 = scmp.ne.s32.totalorder %s144, %s146
      %p153 = scmp.eq.s32.totalorder %s21, 1
      %p154 = por %p152, %p153
      %p155 = scmp.ne.s32.totalorder %s146, %s147
      %p156 = scmp.eq.s32.totalorder %s21, 0
      %p157 = por %p155, %p156
      %p158 = scmp.ne.s32.totalorder %s146, %s147
      %p159 = scmp.eq.s32.totalorder %s22, 1
      %p160 = por %p158, %p159
      %p162 = scmp.ne.s32.totalorder %s147, %s161
      %p163 = scmp.eq.s32.totalorder %s22, 0
      %p164 = por %p162, %p163
      %s166 = sadd.s32 %s165, 1
      %p169 = scmp.eq.s32.totalorder %s16, 1
      %p170 = scmp.ne.s32.totalorder %s165, %s167
      %p171 = scmp.eq.s32.totalorder %s16, 0
      %p172 = por %p170, %p171
      %p173 = scmp.ne.s32.totalorder %s165, %s167
      %p174 = scmp.eq.s32.totalorder %s21, 1
      %p175 = por %p173, %p174
      %p176 = scmp.ne.s32.totalorder %s167, %s168
      %p177 = scmp.eq.s32.totalorder %s21, 0
      %p178 = por %p176, %p177
      %p179 = scmp.ne.s32.totalorder %s167, %s168
      %p180 = scmp.eq.s32.totalorder %s22, 1
      %p181 = por %p179, %p180
      %p183 = scmp.ne.s32.totalorder %s168, %s182
      %p184 = scmp.eq.s32.totalorder %s22, 0
      %p185 = por %p183, %p184
      %s187 = sadd.s32 %s186, 1
      %p190 = scmp.eq.s32.totalorder %s16, 1
      %p191 = scmp.ne.s32.totalorder %s186, %s188
      %p192 = scmp.eq.s32.totalorder %s16, 0
      %p193 = por %p191, %p192
      %p194 = scmp.ne.s32.totalorder %s186, %s188
      %p195 = scmp.eq.s32.totalorder %s21, 1
      %p196 = por %p194, %p195
      %p197 = scmp.ne.s32.totalorder %s188, %s189
      %p198 = scmp.eq.s32.totalorder %s21, 0
      %p199 = por %p197, %p198
      %p200 = scmp.ne.s32.totalorder %s188, %s189
      %p201 = scmp.eq.s32.totalorder %s22, 1
      %p202 = por %p200, %p201
      %p204 = scmp.ne.s32.totalorder %s189, %s203
      %p205 = scmp.eq.s32.totalorder %s22, 0
      %p206 = por %p204, %p205
      %s207 = ssub.s32 %s23, %s35
      %s208 = ssub.s32 %s24, %s31
      %s209 = sor.u32 %s207, %s208
      %p210 = scmp.eq.s32.totalorder %s209, 0
      %s212 = sadd.s32 %s211, 1
      %s213 = scalar_select %p210, %s211, %s212
      %p216 = pneg %p210
      %p217 = scmp.eq.s32.totalorder %s16, 1
      %p218 = por %p216, %p217
      %p219 = scmp.ne.s32.totalorder %s211, %s214
      %p220 = scmp.eq.s32.totalorder %s16, 0
      %p221 = por %p219, %p220
      %p222 = scmp.ne.s32.totalorder %s211, %s214
      %p223 = scmp.eq.s32.totalorder %s21, 1
      %p224 = por %p222, %p223
      %p225 = scmp.ne.s32.totalorder %s214, %s215
      %p226 = scmp.eq.s32.totalorder %s21, 0
      %p227 = por %p225, %p226
      %p228 = scmp.ne.s32.totalorder %s214, %s215
      %p229 = scmp.eq.s32.totalorder %s22, 1
      %p230 = por %p228, %p229
      %p232 = scmp.ne.s32.totalorder %s215, %s231
      %p233 = scmp.eq.s32.totalorder %s22, 0
      %p234 = por %p232, %p233
      %p235 = scmp.le.s32.totalorder 1, %s16
      %p236 = scmp.lt.s32.totalorder %s16, 3
      %p237 = pnand %p235, %p236
      %p238 = pneg %p237
      // Predicated region
      $region9: #{tpu_custom_call.1} parent=5 // pred_check
        _
      $region10: #{tpu_custom_call.1} parent=5 // pred_check_branch
        %240 = sbr.rel (%p237) target = $region12
      $region11: #{tpu_custom_call.1} parent=5 // pred_region
        %s241 = ssub.s32 %s16, 1
        // Predicated region
        $region13: #{tpu_custom_call.1} parent=11 // pred_check
          %p242 = pneg %p157
        $region14: #{tpu_custom_call.1} parent=11 // pred_check_branch
          %244 = sbr.rel (%p242) target = $region16
        $region15: #{tpu_custom_call.1} parent=11 // pred_region
          _
        $region16: #{tpu_custom_call.1} parent=11 // pred_fallthru
          _
        // Predicated region
        $region17: #{tpu_custom_call.1} parent=11 // pred_check
          %p245 = pneg %p178
        $region18: #{tpu_custom_call.1} parent=11 // pred_check_branch
          %247 = sbr.rel (%p245) target = $region20
        $region19: #{tpu_custom_call.1} parent=11 // pred_region
          _
        $region20: #{tpu_custom_call.1} parent=11 // pred_fallthru
          _
        // Predicated region
        $region21: #{tpu_custom_call.1} parent=11 // pred_check
          %p248 = pneg %p199
        $region22: #{tpu_custom_call.1} parent=11 // pred_check_branch
          %250 = sbr.rel (%p248) target = $region24
        $region23: #{tpu_custom_call.1} parent=11 // pred_region
          _
        $region24: #{tpu_custom_call.1} parent=11 // pred_fallthru
          _
      $region12: #{tpu_custom_call.1} parent=5 // pred_fallthru
        _
      %p251 = scmp.lt.s32.totalorder %s16, 2
      // Predicated region
      $region25: #{tpu_custom_call.1} parent=5 // pred_check
        %p252 = pneg %p251
      $region26: #{tpu_custom_call.1} parent=5 // pred_check_branch
        %254 = sbr.rel (%p252) target = $region28
      $region27: #{tpu_custom_call.1} parent=5 // pred_region
        // Predicated region
        $region29: #{tpu_custom_call.1} parent=27 // pred_check
          %p255 = pneg %p50
        $region30: #{tpu_custom_call.1} parent=27 // pred_check_branch
          %257 = sbr.rel (%p255) target = $region32
        $region31: #{tpu_custom_call.1} parent=27 // pred_region
          %s258 = smul.u32 2, %s24
          %p259 = scmp.lt.s32.totalorder %s23, 1
          %s260 = scalar_select %p259, %s23, 1
          %p261 = scmp.lt.s32.totalorder %s258, 1
          %s262 = scalar_select %p261, %s258, 1
          %s263 = smul.addr %s260, 2
          %s264 = sadd.s32 %s262, %s263
          %s265 = smul.addr %s264, 8
          %s266 = scalar_lea.vmem %s0, %s265
          %s267 = smul.u32 2, %s24
        $region32: #{tpu_custom_call.1} parent=27 // pred_fallthru
          _
        // Predicated region
        $region33: #{tpu_custom_call.1} parent=27 // pred_check
          %p268 = pneg %p76
        $region34: #{tpu_custom_call.1} parent=27 // pred_check_branch
          %270 = sbr.rel (%p268) target = $region36
        $region35: #{tpu_custom_call.1} parent=27 // pred_region
          %p271 = scmp.lt.s32.totalorder %s23, 1
          %s272 = scalar_select %p271, %s23, 1
          %s273 = smul.addr %s272, 4
          %s274 = scalar_lea.vmem %s1, %s273
        $region36: #{tpu_custom_call.1} parent=27 // pred_fallthru
          _
        // Predicated region
        $region37: #{tpu_custom_call.1} parent=27 // pred_check
          %p275 = pneg %p102
        $region38: #{tpu_custom_call.1} parent=27 // pred_check_branch
          %277 = sbr.rel (%p275) target = $region40
        $region39: #{tpu_custom_call.1} parent=27 // pred_region
          %p278 = scmp.lt.s32.totalorder %s23, 1
          %s279 = scalar_select %p278, %s23, 1
          %s280 = smul.addr %s279, 4
          %s281 = scalar_lea.vmem %s2, %s280
        $region40: #{tpu_custom_call.1} parent=27 // pred_fallthru
          _
        // Predicated region
        $region41: #{tpu_custom_call.1} parent=27 // pred_check
          %p282 = pneg %p130
        $region42: #{tpu_custom_call.1} parent=27 // pred_check_branch
          %284 = sbr.rel (%p282) target = $region44
        $region43: #{tpu_custom_call.1} parent=27 // pred_region
          %s285 = smul.u32 2, %s24
          %p286 = scmp.lt.s32.totalorder %s23, 1
          %s287 = scalar_select %p286, %s23, 1
          %p288 = scmp.lt.s32.totalorder %s285, 1
          %s289 = scalar_select %p288, %s285, 1
          %s290 = smul.addr %s287, 2
          %s291 = sadd.s32 %s289, %s290
          %s292 = smul.addr %s291, 4
          %s293 = scalar_lea.vmem %s3, %s292
          %s294 = smul.u32 2, %s24
        $region44: #{tpu_custom_call.1} parent=27 // pred_fallthru
          _
      $region28: #{tpu_custom_call.1} parent=5 // pred_fallthru
        _
      %p295 = scmp.le.s32.totalorder 1, %s16
      %p296 = scmp.lt.s32.totalorder %s16, 3
      %p297 = pnand %p295, %p296
      %p298 = pneg %p297
      // Predicated region
      $region45: #{tpu_custom_call.1} parent=5 // pred_check
        _
      $region46: #{tpu_custom_call.1} parent=5 // pred_check_branch
        %300 = sbr.rel (%p297) target = $region48
      $region47: #{tpu_custom_call.1} parent=5 // pred_region
        %s301 = ssub.s32 %s16, 1
        %s302 = smul.u32 2, %s26
        %p303 = scmp.lt.s32.totalorder %s25, 1
        %s304 = scalar_select %p303, %s25, 1
        %p305 = scmp.lt.s32.totalorder %s302, 1
        %s306 = scalar_select %p305, %s302, 1
        %s307 = smul.addr %s304, 2
        %s308 = sadd.s32 %s306, %s307
        %s309 = smul.addr %s308, 8
        %s310 = scalar_lea.vmem %s0, %s309
        %p311 = pneg %p56
        %p312 = pneg %p53
        %p313 = scmp.lt.s32.totalorder %s25, 1
        %s314 = scalar_select %p313, %s25, 1
        %s315 = smul.addr %s314, 4
        %s316 = scalar_lea.vmem %s1, %s315
        %p317 = pneg %p82
        %p318 = pneg %p79
        %p319 = scmp.lt.s32.totalorder %s25, 1
        %s320 = scalar_select %p319, %s25, 1
        %s321 = smul.addr %s320, 4
        %s322 = scalar_lea.vmem %s2, %s321
        %p323 = pneg %p108
        %p324 = pneg %p105
        %s325 = smul.u32 2, %s26
        %p326 = scmp.lt.s32.totalorder %s25, 1
        %s327 = scalar_select %p326, %s25, 1
        %p328 = scmp.lt.s32.totalorder %s325, 1
        %s329 = scalar_select %p328, %s325, 1
        %s330 = smul.addr %s327, 2
        %s331 = sadd.s32 %s329, %s330
        %s332 = smul.addr %s331, 4
        %s333 = scalar_lea.vmem %s3, %s332
        %p334 = pneg %p136
        %p335 = pneg %p133
        %p336 = pneg %p157
        %p337 = pneg %p154
        %p338 = pneg %p178
        %p339 = pneg %p175
        %p340 = pneg %p199
        %p341 = pneg %p196
        %p342 = pneg %p227
        %p343 = pneg %p224
        %s344 = sand.u32 %s214, 1
        %s345 = scalar_lea.sflag [#allocation3], %s344
        %s346 = sand.u32 %s214, 1
        %s347 = smul.addr %s346, 8
        %s348 = scalar_lea.vmem [#allocation2], %s347
        %s349 = smul.u32 2, %s26
        %p350 = scmp.lt.s32.totalorder %s25, 1
        %s351 = scalar_select %p350, %s25, 1
        %p352 = scmp.lt.s32.totalorder %s349, 1
        %s353 = scalar_select %p352, %s349, 1
        %s354 = smul.addr %s351, 2
        %s355 = sadd.s32 %s353, %s354
        %s356 = smul.addr %s355, 8
        %s357 = scalar_lea.vmem %s0, %s356
        %s358 = smul.u32 2, %s26
        %p359 = scmp.lt.s32.totalorder %s25, 1
        %s360 = scalar_select %p359, %s25, 1
        %s361 = smul.addr %s360, 4
        %s362 = scalar_lea.vmem %s1, %s361
        %p363 = scmp.lt.s32.totalorder %s25, 1
        %s364 = scalar_select %p363, %s25, 1
        %s365 = smul.addr %s364, 4
        %s366 = scalar_lea.vmem %s2, %s365
        %s367 = smul.u32 2, %s26
        %p368 = scmp.lt.s32.totalorder %s25, 1
        %s369 = scalar_select %p368, %s25, 1
        %p370 = scmp.lt.s32.totalorder %s367, 1
        %s371 = scalar_select %p370, %s367, 1
        %s372 = smul.addr %s369, 2
        %s373 = sadd.s32 %s371, %s372
        %s374 = smul.addr %s373, 4
        %s375 = scalar_lea.vmem %s3, %s374
        %s376 = smul.u32 2, %s26
        %s377 = smul.u32 2, %s26
        %v379 = vld [vmem:[%s357] sm:$0xff]
        %v380 = vld [vmem:[%s357 + $0x8] sm:$0xff]
        %v381 = vld [vmem:[%s362] sm:$0xf]
        %383 = vset.pattern.permute.xlu0 0
        %384 = vperm.xlu0 %383, %v379
        %v385 = vpop.permute.xlu0 %384
        %388 = vset.pattern.permute.xlu0 0
        %389 = vperm.xlu0 %388, %v380
        %v390 = vpop.permute.xlu0 %389
        %v392 = vlaneseq
        %v393 = vshrl.u32 %v392, 7
        %v394 = vsub.s32 0, %v393
        %v395 = vrot.slane %v381, %v394
        %v396 = vsub.f32 %v385, %v395
        %v397 = vsub.f32 %v390, %v395
        %v398 = vmul.f32 %v396, %v396
        %v399 = vmul.f32 %v397, %v397
        %v400 = vadd.f32 %v398, 0.0
        %v401 = vadd.f32 %v399, 0.0
        %402 = vset.pattern.permute.xlu0 1
        %403 = vperm.xlu0 %402, %v379
        %v404 = vpop.permute.xlu0 %403
        %406 = vset.pattern.permute.xlu0 1
        %407 = vperm.xlu0 %406, %v380
        %v408 = vpop.permute.xlu0 %407
        %v410 = vlaneseq
        %v411 = vshrl.u32 %v410, 7
        %v412 = vsub.s32 1, %v411
        %v413 = vrot.slane %v381, %v412
        %v414 = vsub.f32 %v404, %v413
        %v415 = vsub.f32 %v408, %v413
        %v416 = vmul.f32 %v414, %v414
        %v417 = vmul.f32 %v415, %v415
        %v418 = vadd.f32 %v400, %v416
        %v419 = vadd.f32 %v401, %v417
        %420 = vset.pattern.permute.xlu0 2
        %421 = vperm.xlu0 %420, %v379
        %v422 = vpop.permute.xlu0 %421
        %424 = vset.pattern.permute.xlu0 2
        %425 = vperm.xlu0 %424, %v380
        %v426 = vpop.permute.xlu0 %425
        %v428 = vlaneseq
        %v429 = vshrl.u32 %v428, 7
        %v430 = vsub.s32 2, %v429
        %v431 = vrot.slane %v381, %v430
        %v432 = vsub.f32 %v422, %v431
        %v433 = vsub.f32 %v426, %v431
        %v434 = vmul.f32 %v432, %v432
        %v435 = vmul.f32 %v433, %v433
        %v436 = vadd.f32 %v418, %v434
        %v437 = vadd.f32 %v419, %v435
        %vm438 = vcmp.gt.f32.partialorder %v381, 0.5
        %vm439 = vcmp.le.f32.partialorder %v436, 16.0
        %vm440 = vcmp.le.f32.partialorder %v437, 16.0
        %v441 = vsel %vm438, 1, 0
        %v442 = vlaneseq
        %v443 = vshrl.u32 %v442, 7
        %v444 = vsub.s32 3, %v443
        %v445 = vrot.slane %v441, %v444
        %vm446 = vcmp.eq.s32.totalorder %v445, 1
        %vm447 = vmand %vm446, %vm439
        %vm448 = vmand %vm446, %vm440
        %v449 = vsel %vm447, %v436, 1e+30
        %v450 = vsel %vm448, %v437, 1e+30
        %vm451 = vcmask 64512
        %v452 = vsel %vm451, %v449, inf
        %453 = vmin.xlane.f32.xlu0 %v452
        %v454 = vpop.xlane.xlu0 %453
        %v455 = vsel %vm451, %v450, inf
        %456 = vmin.xlane.f32.xlu0 %v455
        %v457 = vpop.xlane.xlu0 %456
        %v458 = vlaneseq
        %v459 = vand.u32 %v458, 127
        %vm460 = vcmp.eq.f32.partialorder %v449, %v454
        %vm461 = vcmp.eq.f32.partialorder %v450, %v457
        %v462 = vsel %vm460, %v459, 8
        %v463 = vsel %vm461, %v459, 8
        %v464 = vsel %vm451, %v462, 2147483647
        %v465 = vand.u32 %v464, 65535
        %v466 = vshra.s32 %v464, 16
        %v467 = vcvt.s32.f32 %v465
        %v468 = vcvt.s32.f32 %v466
        %469 = vmin.xlane.f32.xlu0 %v468
        %v470 = vpop.xlane.xlu0 %469
        %vm471 = vcmp.eq.f32.partialorder %v468, %v470
        %v472 = vsel %vm471, %v467, inf
        %473 = vmin.xlane.f32.xlu0 %v472
        %v474 = vpop.xlane.xlu0 %473
        %v475 = vcvt.f32.s32 %v474
        %v476 = vcvt.f32.s32 %v470
        %v477 = vshll.u32 %v476, 16
        %v478 = vadd.s32 %v477, %v475
        %v479 = vsel %vm451, %v463, 2147483647
        %v480 = vand.u32 %v479, 65535
        %v481 = vshra.s32 %v479, 16
        %v482 = vcvt.s32.f32 %v480
        %v483 = vcvt.s32.f32 %v481
        %484 = vmin.xlane.f32.xlu0 %v483
        %v485 = vpop.xlane.xlu0 %484
        %vm486 = vcmp.eq.f32.partialorder %v483, %v485
        %v487 = vsel %vm486, %v482, inf
        %488 = vmin.xlane.f32.xlu0 %v487
        %v489 = vpop.xlane.xlu0 %488
        %v490 = vcvt.f32.s32 %v489
        %v491 = vcvt.f32.s32 %v485
        %v492 = vshll.u32 %v491, 16
        %v493 = vadd.s32 %v492, %v490
        %vm494 = vcmp.ge.f32.partialorder %v454, 1e+30
        %vm495 = vcmp.ge.f32.partialorder %v457, 1e+30
        %vm496 = vcmp.le.f32.partialorder %v379, 0.5
        %vm497 = vcmp.le.f32.partialorder %v380, 0.5
        %vm498 = vmor %vm494, %vm496
        %vm499 = vmor %vm495, %vm497
        %v500 = vsel %vm498, 0, %v478
        %v501 = vsel %vm499, 0, %v493
        %502 = vset.pattern.permute.xlu0 3
        %503 = vperm.xlu0 %502, %v500
        %v504 = vpop.permute.xlu0 %503
        %505 = vset.pattern.permute.xlu0 3
        %506 = vperm.xlu0 %505, %v501
        %v507 = vpop.permute.xlu0 %506
        %vm508 = vcmp.eq.s32.totalorder %v459, %v504
        %vm509 = vcmp.eq.s32.totalorder %v459, %v507
        %v510 = vsel %vm508, 1, 0
        %v511 = vsel %vm509, 1, 0
        %v512 = vcvt.s32.f32 %v510
        %v513 = vcvt.s32.f32 %v511
        %v514 = vpack.c.bf16 %v513, %v512
        %v515 = vld [vmem:[%s366] sm:$0xf]
        %v517 = vsel %vm451, %v514, 0
        %vm519 = vcmask 1043456
        %v521 = vsel %vm519, %v515, 0
        %523 = vmatprep.subr.bf16.mxu0 0
        %524 = vmatpush1.bf16.msra.mxu0 %v521
        %525 = vmatprep.subr.bf16.mxu0 0
        %526 = vmatpush1.bf16.msra.mxu0 0
        %527 = vmatprep.subr.bf16.mxu0 0
        %528 = vmatpush1.bf16.msra.mxu0 0
        %529 = vmatprep.subr.bf16.mxu0 0
        %530 = vmatpush1.bf16.msra.mxu0 0
        %531 = vmatprep.subr.bf16.mxu0 0
        %532 = vmatpush1.bf16.msra.mxu0 0
        %533 = vmatprep.subr.bf16.mxu0 0
        %534 = vmatpush1.bf16.msra.mxu0 0
        %535 = vmatprep.subr.bf16.mxu0 0
        %536 = vmatpush1.bf16.msra.mxu0 0
        %537 = vmatprep.subr.bf16.mxu0 0
        %538 = vmatpush1.bf16.msra.mxu0 0
        %539 = vmatprep.subr.bf16.mxu0 0
        %540 = vmatpush1.bf16.msra.mxu0 0
        %541 = vmatprep.subr.bf16.mxu0 0
        %542 = vmatpush1.bf16.msra.mxu0 0
        %543 = vmatprep.subr.bf16.mxu0 0
        %544 = vmatpush1.bf16.msra.mxu0 0
        %545 = vmatprep.subr.bf16.mxu0 0
        %546 = vmatpush1.bf16.msra.mxu0 0
        %547 = vmatprep.subr.bf16.mxu0 0
        %548 = vmatpush1.bf16.msra.mxu0 0
        %549 = vmatprep.subr.bf16.mxu0 0
        %550 = vmatpush1.bf16.msra.mxu0 0
        %551 = vmatprep.subr.bf16.mxu0 0
        %552 = vmatpush1.bf16.msra.mxu0 0
        %553 = vmatprep.subr.bf16.mxu0 0
        %554 = vmatpush1.bf16.msra.mxu0 0
        %555 = vmatprep.mubr.bf16.mxu0 0
        %556 = vmatmul.mubr.bf16.gmra.mrb[0].mxu0 %v517
        %v557 = vpop.f32.mrb[0].mxu0
        %v558 = vadd.f32 0.0, %v557
        %v559 = vpop.f32.mrb[0].mxu0
        %v560 = vpop.f32.mrb[0].mxu0
        %v561 = vadd.f32 0.0, %v560
        %v562 = vpop.f32.mrb[0].mxu0
        %563 = vdwg.mxu0
        %v564 = vpack.c.bf16 %v561, %v558
        %v565 = vld [vmem:[%s4] sm:$0xf]
        %v566 = vld [vmem:[%s4 + $0x4] sm:$0xf]
        %v567 = vld [vmem:[%s4 + $0x8] sm:$0xf]
        %v568 = vld [vmem:[%s4 + $0xc] sm:$0xf]
        %v569 = vld [vmem:[%s4 + $0x10] sm:$0xf]
        %v570 = vld [vmem:[%s4 + $0x14] sm:$0xf]
        %v571 = vld [vmem:[%s4 + $0x18] sm:$0xf]
        %v572 = vld [vmem:[%s4 + $0x1c] sm:$0xf]
        %v573 = vld [vmem:[%s4 + $0x20] sm:$0xf]
        %v574 = vld [vmem:[%s4 + $0x24] sm:$0xf]
        %v575 = vld [vmem:[%s4 + $0x28] sm:$0xf]
        %v576 = vld [vmem:[%s4 + $0x2c] sm:$0xf]
        %v577 = vld [vmem:[%s4 + $0x30] sm:$0xf]
        %v578 = vld [vmem:[%s4 + $0x34] sm:$0xf]
        %v579 = vld [vmem:[%s4 + $0x38] sm:$0xf]
        %v580 = vld [vmem:[%s4 + $0x3c] sm:$0xf]
        %v581 = vld [vmem:[%s375] sm:$0xf]
        %v582 = vld [vmem:[%s375 + $0x4] sm:$0xf]
        %v583 = vld [vmem:[%s5] sm:$0xf]
        %v584 = vld [vmem:[%s5 + $0x4] sm:$0xf]
        %v585 = vld [vmem:[%s5 + $0x8] sm:$0xf]
        %v586 = vld [vmem:[%s5 + $0xc] sm:$0xf]
        %v587 = vld [vmem:[%s5 + $0x10] sm:$0xf]
        %v588 = vld [vmem:[%s5 + $0x14] sm:$0xf]
        %v589 = vld [vmem:[%s5 + $0x18] sm:$0xf]
        %v590 = vld [vmem:[%s5 + $0x1c] sm:$0xf]
        %v593 = vunpack.c.l.b16 %v581
        %v594 = vunpack.c.l.b16 %v582
        %v595 = vpack.c.b16 %v594, %v593
        %v604 = vunpack.c.l.b16 %v583
        %v605 = vunpack.c.l.b16 %v584
        %v606 = vunpack.c.l.b16 %v585
        %v607 = vunpack.c.l.b16 %v586
        %v608 = vunpack.c.l.b16 %v587
        %v609 = vunpack.c.l.b16 %v588
        %v610 = vunpack.c.l.b16 %v589
        %v611 = vunpack.c.l.b16 %v590
        %v612 = vpack.c.b16 %v605, %v604
        %v613 = vpack.c.b16 %v607, %v606
        %v614 = vpack.c.b16 %v609, %v608
        %v615 = vpack.c.b16 %v611, %v610
        %vm620 = vcmask 523264
        %v622 = vsel %vm620, %v595, 0
        %624 = vmatprep.subr.bf16.mxu0 0
        %625 = vmatpush1.bf16.msra.mxu0 %v612
        %626 = vmatprep.subr.bf16.mxu0 0
        %627 = vmatpush1.bf16.msra.mxu0 %v613
        %628 = vmatprep.subr.bf16.mxu0 0
        %629 = vmatpush1.bf16.msra.mxu0 %v614
        %630 = vmatprep.subr.bf16.mxu0 0
        %631 = vmatpush1.bf16.msra.mxu0 %v615
        %632 = vmatprep.subr.bf16.mxu0 0
        %633 = vmatpush1.bf16.msra.mxu0 0
        %634 = vmatprep.subr.bf16.mxu0 0
        %635 = vmatpush1.bf16.msra.mxu0 0
        %636 = vmatprep.subr.bf16.mxu0 0
        %637 = vmatpush1.bf16.msra.mxu0 0
        %638 = vmatprep.subr.bf16.mxu0 0
        %639 = vmatpush1.bf16.msra.mxu0 0
        %640 = vmatprep.subr.bf16.mxu0 0
        %641 = vmatpush1.bf16.msra.mxu0 0
        %642 = vmatprep.subr.bf16.mxu0 0
        %643 = vmatpush1.bf16.msra.mxu0 0
        %644 = vmatprep.subr.bf16.mxu0 0
        %645 = vmatpush1.bf16.msra.mxu0 0
        %646 = vmatprep.subr.bf16.mxu0 0
        %647 = vmatpush1.bf16.msra.mxu0 0
        %648 = vmatprep.subr.bf16.mxu0 0
        %649 = vmatpush1.bf16.msra.mxu0 0
        %650 = vmatprep.subr.bf16.mxu0 0
        %651 = vmatpush1.bf16.msra.mxu0 0
        %652 = vmatprep.subr.bf16.mxu0 0
        %653 = vmatpush1.bf16.msra.mxu0 0
        %654 = vmatprep.subr.bf16.mxu0 0
        %655 = vmatpush1.bf16.msra.mxu0 0
        %656 = vmatprep.mubr.bf16.mxu0 0
        %657 = vmatmul.mubr.bf16.gmra.mrb[0].mxu0 %v622
        %v658 = vpop.f32.mrb[0].mxu0
        %v659 = vadd.f32 0.0, %v658
        %v660 = vpop.f32.mrb[0].mxu0
        %v661 = vpop.f32.mrb[0].mxu0
        %v662 = vadd.f32 0.0, %v661
        %v663 = vpop.f32.mrb[0].mxu0
        %664 = vdwg.mxu0
        %v681 = vunpack.c.l.b16 %v565
        %v682 = vunpack.c.l.b16 %v566
        %v683 = vunpack.c.l.b16 %v567
        %v684 = vunpack.c.l.b16 %v568
        %v685 = vunpack.c.l.b16 %v569
        %v686 = vunpack.c.l.b16 %v570
        %v687 = vunpack.c.l.b16 %v571
        %v688 = vunpack.c.l.b16 %v572
        %v689 = vunpack.c.l.b16 %v573
        %v690 = vunpack.c.l.b16 %v574
        %v691 = vunpack.c.l.b16 %v575
        %v692 = vunpack.c.l.b16 %v576
        %v693 = vunpack.c.l.b16 %v577
        %v694 = vunpack.c.l.b16 %v578
        %v695 = vunpack.c.l.b16 %v579
        %v696 = vunpack.c.l.b16 %v580
        %v697 = vpack.c.b16 %v682, %v681
        %v698 = vpack.c.b16 %v684, %v683
        %v699 = vpack.c.b16 %v686, %v685
        %v700 = vpack.c.b16 %v688, %v687
        %v701 = vpack.c.b16 %v690, %v689
        %v702 = vpack.c.b16 %v692, %v691
        %v703 = vpack.c.b16 %v694, %v693
        %v704 = vpack.c.b16 %v696, %v695
        %713 = vmatprep.subr.bf16.mxu0 0
        %714 = vmatpush1.bf16.msra.mxu0 %v697
        %715 = vmatprep.subr.bf16.mxu0 0
        %716 = vmatpush1.bf16.msra.mxu0 %v698
        %717 = vmatprep.subr.bf16.mxu0 0
        %718 = vmatpush1.bf16.msra.mxu0 %v699
        %719 = vmatprep.subr.bf16.mxu0 0
        %720 = vmatpush1.bf16.msra.mxu0 %v700
        %721 = vmatprep.subr.bf16.mxu0 0
        %722 = vmatpush1.bf16.msra.mxu0 %v701
        %723 = vmatprep.subr.bf16.mxu0 0
        %724 = vmatpush1.bf16.msra.mxu0 %v702
        %725 = vmatprep.subr.bf16.mxu0 0
        %726 = vmatpush1.bf16.msra.mxu0 %v703
        %727 = vmatprep.subr.bf16.mxu0 0
        %728 = vmatpush1.bf16.msra.mxu0 %v704
        %729 = vmatprep.subr.bf16.mxu0 0
        %730 = vmatpush1.bf16.msra.mxu0 0
        %731 = vmatprep.subr.bf16.mxu0 0
        %732 = vmatpush1.bf16.msra.mxu0 0
        %733 = vmatprep.subr.bf16.mxu0 0
        %734 = vmatpush1.bf16.msra.mxu0 0
        %735 = vmatprep.subr.bf16.mxu0 0
        %736 = vmatpush1.bf16.msra.mxu0 0
        %737 = vmatprep.subr.bf16.mxu0 0
        %738 = vmatpush1.bf16.msra.mxu0 0
        %739 = vmatprep.subr.bf16.mxu0 0
        %740 = vmatpush1.bf16.msra.mxu0 0
        %741 = vmatprep.subr.bf16.mxu0 0
        %742 = vmatpush1.bf16.msra.mxu0 0
        %743 = vmatprep.subr.bf16.mxu0 0
        %744 = vmatpush1.bf16.msra.mxu0 0
        %745 = vmatprep.mubr.bf16.mxu0 0
        %746 = vmatmul.mubr.bf16.gmra.mrb[0].mxu0 %v564
        %v747 = vpop.f32.mrb[0].mxu0
        %v748 = vadd.f32 %v659, %v747
        %v749 = vpop.f32.mrb[0].mxu0
        %v750 = vpop.f32.mrb[0].mxu0
        %v751 = vadd.f32 %v662, %v750
        %v752 = vpop.f32.mrb[0].mxu0
        %753 = vdwg.mxu0
        %v754 = vld [vmem:[%s6] sm:$0x1]
        %v756 = vlaneseq
        %v757 = vshrl.u32 %v756, 7
        %v758 = vsub.s32 0, %v757
        %v759 = vrot.slane %v754, %v758
        %v761 = vadd.f32 %v748, %v759
        %v762 = vadd.f32 %v751, %v759
        %v763 = vmax.f32 %v761, 0.0
        %v764 = vmax.f32 %v762, 0.0
        %v765 = vpack.c.bf16 %v764, %v763
        %v767 = vunpack.c.l.b16 %v765
        %v768 = vunpack.c.h.b16 %v765
        %v769 = vpack.c.b16 %v767, %v767
        %v770 = vpack.c.b16 %v768, %v768
        %vm773 = vcmask 257024
        %774 = vst.msk [vmem:[%s348] sm:$0xf] %vm773, %v769
        %775 = vst.msk [vmem:[%s348 + $0x4] sm:$0xf] %vm773, %v770
        %s776 = sand.u32 %s214, 1
        %s777 = scalar_lea.sflag [#allocation3], %s776
        %s778 = sand.u32 %s214, 1
        %s779 = smul.addr %s778, 8
        %s780 = scalar_lea.vmem [#allocation2], %s779
        // Predicated region
        $region49: #{tpu_custom_call.1} parent=47 // pred_check
          %p781 = pneg %p224
        $region50: #{tpu_custom_call.1} parent=47 // pred_check_branch
          %783 = sbr.rel (%p781) target = $region52
        $region51: #{tpu_custom_call.1} parent=47 // pred_region
          %s784 = smul.u32 2, %s26
          %s786 = ssub.s32 128, 128
          %787 = vsyncadd %s777, %s786
          %s788 = smul.addr %s25, 2
          %s789 = sadd.s32 %s784, %s788
          %s790 = smul.addr %s789, 64
          %s791 = scalar_lea.hbm %s7, %s790
          %s792 = sshll.u32 %s780, 4
          %s793 = int_to_ptr.vmem [resolvable:$true] %s792
          %798 = dma.vmem_to_hbm [thread:$0]  %s793, 128, %s791, %s777, 64, 64, 4
        $region52: #{tpu_custom_call.1} parent=47 // pred_fallthru
          _
      $region48: #{tpu_custom_call.1} parent=5 // pred_fallthru
        _
      %p799 = scmp.le.s32.totalorder 2, %s16
      // Predicated region
      $region53: #{tpu_custom_call.1} parent=5 // pred_check
        %p800 = pneg %p799
      $region54: #{tpu_custom_call.1} parent=5 // pred_check_branch
        %802 = sbr.rel (%p800) target = $region56
      $region55: #{tpu_custom_call.1} parent=5 // pred_region
        %s803 = ssub.s32 %s16, 2
        // Predicated region
        $region57: #{tpu_custom_call.1} parent=55 // pred_check
          %p804 = pneg %p230
        $region58: #{tpu_custom_call.1} parent=55 // pred_check_branch
          %806 = sbr.rel (%p804) target = $region60
        $region59: #{tpu_custom_call.1} parent=55 // pred_region
          %s807 = sand.u32 %s215, 1
          %s808 = scalar_lea.sflag [#allocation3], %s807
          %s809 = sand.u32 %s215, 1
          %s810 = smul.addr %s809, 8
          %s811 = scalar_lea.vmem [#allocation2], %s810
          %812 = dma.done %s808, 128
        $region60: #{tpu_custom_call.1} parent=55 // pred_fallthru
          _
      $region56: #{tpu_custom_call.1} parent=5 // pred_fallthru
        _
    $region6: #{tpu_custom_call.1} parent=1 // loop_footer
      %s20 = sadd.s32 1, %s16
    $region7: #{tpu_custom_call.1} parent=1 // loop_footer_branch
      %15 = sbr.rel target = $region3
    $region8: #{tpu_custom_call.1} parent=1 // loop_exit
      _
    %813 = vsyncpa [#allocation3], 1
    %s814 = scalar_lea.sflag [#allocation3], 1
    %815 = vsyncpa %s814, 1

</llo_original>
